<compile_context>
chip_gen: v5e
topology: v5e:2x2
jax: 0.10.0
libtpu: 0.0.40
codegen_flags: <defaults>
</compile_context>

<pallas_src>
import numpy as np
import jax
import jax.numpy as jnp
from jax.experimental import pallas as pl
from jax.experimental.pallas import tpu as pltpu

SLAB_ROWS = 16   # packed constant-parameter slab is (16, 128) f32 = 8 KB


def agent_kernel(x_ref, pt_ref, slab_ref, o_ref):
    x = x_ref[...]                                   # (Bb, M, 2)
    pt = pt_ref[...]                                 # (Bb, 1, 2)

    # --- unpack the constant slab (static VMEM slices, no extra DMAs) ---
    a0e = slab_ref[0:1, :].reshape(1, 1, 128)        # embed-col-0 folded through W_e
    a1e = slab_ref[1:2, :].reshape(1, 1, 128)        # embed-col-1 folded through W_e
    a0m = slab_ref[2:3, :].reshape(1, 1, 128)        # embed-col-0 folded through W_mean
    a1m = slab_ref[3:4, :].reshape(1, 1, 128)        # embed-col-1 folded through W_mean
    wp0 = slab_ref[4:5, :].reshape(1, 1, 128)        # W columns acting on pt_sc[0]
    wp1 = slab_ref[5:6, :].reshape(1, 1, 128)        # W columns acting on pt_sc[1]
    cst = slab_ref[6:7, :].reshape(1, 1, 128)        # be@W_e + be@W_mean + bw (pre-summed)
    wv = slab_ref[7:8, :].reshape(1, 1, 128)         # V weight row
    bv = slab_ref[8:9, 0:1]                          # (1, 1) V bias

    # per-instance means of the 2 input columns (folds mean(E)@W_mean by linearity)
    mx = jnp.mean(x, axis=1, keepdims=True)          # (Bb, 1, 2)

    # one per-instance 128-wide bias row: mean(E)@Wm + pt_sc@Wp + all constant biases
    bias = (mx[:, :, 0:1] * a0m + mx[:, :, 1:2] * a1m
            + pt[:, :, 0:1] * wp0 + pt[:, :, 1:2] * wp1 + cst)   # (Bb, 1, 128)

    # per-row pre-activation: embed+W_e fold = two broadcast FMAs on the VPU
    pre = x[:, :, 0:1] * a0e + x[:, :, 1:2] * a1e + bias          # (Bb, M, 128)

    # TODO(synk): on v6e/v7x at large B, cast `pre` to bf16 before tanh (EUP bf16
    # throughput ~2x) while keeping the V reduction in f32; keep f32 on v5e.
    a = jnp.tanh(pre)

    # V: Linear(128, 1) as VPU multiply + cross-lane reduce (no N=1 matmul),
    # then sigmoid; output kept 2-D (B, M) so the store is not last-dim-of-1.
    u = jnp.sum(a * wv, axis=-1) + bv                             # (Bb, M)
    o_ref[...] = jax.nn.sigmoid(u)


def pack_params(p):
    """Fold embed into W in float64 and pack everything into one (16,128) slab."""
    we = np.asarray(p["we"], np.float64)             # (32, 2)
    be = np.asarray(p["be"], np.float64)             # (32,)
    ww = np.asarray(p["ww"], np.float64)             # (128, 66)
    bw = np.asarray(p["bw"], np.float64)             # (128,)
    wv = np.asarray(p["wv"], np.float64)             # (1, 128)
    bv = np.asarray(p["bv"], np.float64)             # (1,)

    w_e = ww[:, 0:32].T                              # (32, 128) columns acting on E_i
    w_m = ww[:, 32:64].T                             # (32, 128) columns acting on mean(E)
    wp0 = ww[:, 64]                                  # (128,)    column acting on pt_sc[0]
    wp1 = ww[:, 65]                                  # (128,)    column acting on pt_sc[1]

    slab = np.zeros((SLAB_ROWS, 128), np.float32)
    slab[0] = we[:, 0] @ w_e                         # A0e
    slab[1] = we[:, 1] @ w_e                         # A1e
    slab[2] = we[:, 0] @ w_m                         # A0m
    slab[3] = we[:, 1] @ w_m                         # A1m
    slab[4] = wp0
    slab[5] = wp1
    slab[6] = be @ w_e + be @ w_m + bw               # all constant bias rows pre-summed
    slab[7] = wv.reshape(128)
    slab[8, 0] = bv[0]
    return jnp.asarray(slab)


def agent_net_forward_batch(states_rows, pts, slab, *, block_b=None):
    """Batched forward. states_rows: (B, M, 2) = state[0][1:] per instance,
    pts: (B, 2) = state[1] per instance. Returns (B, M, 1).

    block_b: optional row-blocked grid over the batch axis (must divide B and be
    a multiple of 8). Use it once B*M reaches the thousands; the weight slab's
    index_map is constant so it stays VMEM-resident across grid steps. For very
    large blocks add pltpu.CompilerParams(vmem_limit_bytes=...)."""
    b, m, _ = states_rows.shape
    x = states_rows.astype(jnp.float32)
    pt3 = pts.reshape(b, 1, 2).astype(jnp.float32)
    slab = slab.astype(jnp.float32)

    if block_b is None or block_b >= b:
        vmem = pl.BlockSpec(memory_space=pltpu.MemorySpace.VMEM)
        call = pl.pallas_call(
            agent_kernel,
            out_shape=jax.ShapeDtypeStruct((b, m), jnp.float32),
            in_specs=[vmem, vmem, vmem],
            out_specs=vmem,
        )
    else:
        if b % block_b != 0 or block_b % 8 != 0:
            raise ValueError("block_b must divide B and be a multiple of 8")
        call = pl.pallas_call(
            agent_kernel,
            out_shape=jax.ShapeDtypeStruct((b, m), jnp.float32),
            grid=(b // block_b,),
            in_specs=[
                pl.BlockSpec((block_b, m, 2), lambda i: (i, 0, 0)),
                pl.BlockSpec((block_b, 1, 2), lambda i: (i, 0, 0)),
                pl.BlockSpec((SLAB_ROWS, 128), lambda i: (0, 0)),  # weights stay resident
            ],
            out_specs=pl.BlockSpec((block_b, m), lambda i: (i, 0)),
            compiler_params=pltpu.CompilerParams(
                dimension_semantics=("parallel",)),   # megacore / v7x 2-TC sharding
        )
    out2d = call(x, pt3, slab)
    return out2d[..., None]


def agent_net_forward(state_rows, pt_sc, slab):
    """Single-instance forward matching AgentNet.forward: (M, 2), (2,) -> (M, 1)."""
    return agent_net_forward_batch(state_rows[None], pt_sc[None], slab)[0]


def init_params(key):
    """Deterministic init matching the nn.Linear shapes (uniform +-1/sqrt(fan_in))."""
    ks = jax.random.split(key, 6)

    def lin(kw, kb, fan_in, fan_out):
        bound = 1.0 / jnp.sqrt(fan_in)
        w = jax.random.uniform(kw, (fan_out, fan_in), jnp.float32, -bound, bound)
        b = jax.random.uniform(kb, (fan_out,), jnp.float32, -bound, bound)
        return w, b

    we, be = lin(ks[0], ks[1], 2, 32)      # embed: Linear(2, 32)
    ww, bw = lin(ks[2], ks[3], 66, 128)    # W:     Linear(66, 128)
    wv, bv = lin(ks[4], ks[5], 128, 1)     # V:     Linear(128, 1)
    return {"we": we, "be": be, "ww": ww, "bw": bw, "wv": wv, "bv": bv}


def reference_forward(state_rows, pt_sc, p):
    """Pure-JAX reference mirroring the PyTorch loops."""
    e = state_rows @ p["we"].T + p["be"]                               # (M, 32)
    h = jnp.concatenate([e.mean(axis=0), pt_sc], axis=0)               # (34,)
    z = jnp.concatenate(
        [e, jnp.broadcast_to(h, (e.shape[0], h.shape[0]))], axis=1)    # (M, 66)
    u = jnp.tanh(z @ p["ww"].T + p["bw"]) @ p["wv"].T + p["bv"]        # (M, 1)
    return jax.nn.sigmoid(u)


if __name__ == "__main__":
    key = jax.random.PRNGKey(0)
    k_param, k_state, k_pt, k_state2, k_pt2 = jax.random.split(key, 5)

    params = init_params(k_param)
    slab = pack_params(params)                 # built once (host-side, f64 folds), reused

    # --- small case mirroring AgentNet.forward: B=4 instances, state[0]: (9, 2) ---
    B, N = 4, 9
    M = N - 1
    full_states = jax.random.uniform(k_state, (B, N, 2), jnp.float32)
    pts = jax.random.uniform(k_pt, (B, 2), jnp.float32)
    states_rows = full_states[:, 1:]           # (B, M, 2) rows that get embedded

    out_b = jax.block_until_ready(agent_net_forward_batch(states_rows, pts, slab))
    assert out_b.shape == (B, M, 1)

    out_0 = jax.block_until_ready(agent_net_forward(states_rows[0], pts[0], slab))
    assert out_0.shape == (M, 1)

    ref_b = jax.vmap(reference_forward, in_axes=(0, 0, None))(states_rows, pts, params)
    assert jnp.allclose(out_b, ref_b, atol=2e-5, rtol=2e-5)
    assert jnp.allclose(out_0, ref_b[0], atol=2e-5, rtol=2e-5)

    # --- larger batch exercising the row-blocked parallel grid path ---
    B2 = 64
    full2 = jax.random.uniform(k_state2, (B2, N, 2), jnp.float32)
    pts2 = jax.random.uniform(k_pt2, (B2, 2), jnp.float32)
    rows2 = full2[:, 1:]
    out2 = jax.block_until_ready(
        agent_net_forward_batch(rows2, pts2, slab, block_b=16))
    ref2 = jax.vmap(reference_forward, in_axes=(0, 0, None))(rows2, pts2, params)
    assert out2.shape == (B2, M, 1)
    assert jnp.allclose(out2, ref2, atol=2e-5, rtol=2e-5)

    print("KERNEL_OK")
</pallas_src>

<mosaic_0001>
module attributes {stable_mosaic.version = 11 : i64} {
  func.func @agent_kernel(%arg0: memref<4x8x2xf32, #tpu.memory_space<vmem>>, %arg1: memref<4x1x2xf32, #tpu.memory_space<vmem>>, %arg2: memref<16x128xf32, #tpu.memory_space<vmem>>, %arg3: memref<4x8xf32, #tpu.memory_space<vmem>>) attributes {dimension_semantics = [], scalar_prefetch = 0 : i64, scratch_operands = 0 : i64, tpu.core_type = #tpu.core_type<tc>} {
    %c0 = arith.constant 0 : index
    %c0_0 = arith.constant 0 : index
    %c0_1 = arith.constant 0 : index
    %0 = vector.load %arg0[%c0, %c0_0, %c0_1] : memref<4x8x2xf32, #tpu.memory_space<vmem>>, vector<4x8x2xf32>
    %c0_2 = arith.constant 0 : index
    %c0_3 = arith.constant 0 : index
    %c0_4 = arith.constant 0 : index
    %1 = vector.load %arg1[%c0_2, %c0_3, %c0_4] : memref<4x1x2xf32, #tpu.memory_space<vmem>>, vector<4x1x2xf32>
    %c0_5 = arith.constant 0 : index
    %c0_6 = arith.constant 0 : index
    %2 = vector.load %arg2[%c0_5, %c0_6] : memref<16x128xf32, #tpu.memory_space<vmem>>, vector<1x128xf32>
    %3 = vector.shape_cast %2 : vector<1x128xf32> to vector<1x1x128xf32>
    %c1 = arith.constant 1 : index
    %c0_7 = arith.constant 0 : index
    %4 = vector.load %arg2[%c1, %c0_7] : memref<16x128xf32, #tpu.memory_space<vmem>>, vector<1x128xf32>
    %5 = vector.shape_cast %4 : vector<1x128xf32> to vector<1x1x128xf32>
    %c2 = arith.constant 2 : index
    %c0_8 = arith.constant 0 : index
    %6 = vector.load %arg2[%c2, %c0_8] : memref<16x128xf32, #tpu.memory_space<vmem>>, vector<1x128xf32>
    %7 = vector.shape_cast %6 : vector<1x128xf32> to vector<1x1x128xf32>
    %c3 = arith.constant 3 : index
    %c0_9 = arith.constant 0 : index
    %8 = vector.load %arg2[%c3, %c0_9] : memref<16x128xf32, #tpu.memory_space<vmem>>, vector<1x128xf32>
    %9 = vector.shape_cast %8 : vector<1x128xf32> to vector<1x1x128xf32>
    %c4 = arith.constant 4 : index
    %c0_10 = arith.constant 0 : index
    %10 = vector.load %arg2[%c4, %c0_10] : memref<16x128xf32, #tpu.memory_space<vmem>>, vector<1x128xf32>
    %11 = vector.shape_cast %10 : vector<1x128xf32> to vector<1x1x128xf32>
    %c5 = arith.constant 5 : index
    %c0_11 = arith.constant 0 : index
    %12 = vector.load %arg2[%c5, %c0_11] : memref<16x128xf32, #tpu.memory_space<vmem>>, vector<1x128xf32>
    %13 = vector.shape_cast %12 : vector<1x128xf32> to vector<1x1x128xf32>
    %c6 = arith.constant 6 : index
    %c0_12 = arith.constant 0 : index
    %14 = vector.load %arg2[%c6, %c0_12] : memref<16x128xf32, #tpu.memory_space<vmem>>, vector<1x128xf32>
    %15 = vector.shape_cast %14 : vector<1x128xf32> to vector<1x1x128xf32>
    %c7 = arith.constant 7 : index
    %c0_13 = arith.constant 0 : index
    %16 = vector.load %arg2[%c7, %c0_13] : memref<16x128xf32, #tpu.memory_space<vmem>>, vector<1x128xf32>
    %17 = vector.shape_cast %16 : vector<1x128xf32> to vector<1x1x128xf32>
    %c8 = arith.constant 8 : index
    %c0_14 = arith.constant 0 : index
    %18 = vector.load %arg2[%c8, %c0_14] : memref<16x128xf32, #tpu.memory_space<vmem>>, vector<1x1xf32>
    %cst = arith.constant dense<0.000000e+00> : vector<4x2xf32>
    %19 = vector.multi_reduction <add>, %0, %cst [1] : vector<4x8x2xf32> to vector<4x2xf32>
    %20 = vector.shape_cast %19 : vector<4x2xf32> to vector<4x1x2xf32>
    %cst_15 = arith.constant 8.000000e+00 : f32
    %21 = vector.broadcast %cst_15 : f32 to vector<4x1x2xf32>
    %22 = arith.divf %20, %21 : vector<4x1x2xf32>
    %23 = vector.extract_strided_slice %22 {offsets = [0, 0, 0], sizes = [4, 1, 1], strides = [1, 1, 1]} : vector<4x1x2xf32> to vector<4x1x1xf32>
    %24 = vector.broadcast %23 : vector<4x1x1xf32> to vector<4x1x128xf32>
    %25 = vector.broadcast %7 : vector<1x1x128xf32> to vector<4x1x128xf32>
    %26 = arith.mulf %24, %25 : vector<4x1x128xf32>
    %27 = vector.extract_strided_slice %22 {offsets = [0, 0, 1], sizes = [4, 1, 1], strides = [1, 1, 1]} : vector<4x1x2xf32> to vector<4x1x1xf32>
    %28 = vector.broadcast %27 : vector<4x1x1xf32> to vector<4x1x128xf32>
    %29 = vector.broadcast %9 : vector<1x1x128xf32> to vector<4x1x128xf32>
    %30 = arith.mulf %28, %29 : vector<4x1x128xf32>
    %31 = arith.addf %26, %30 : vector<4x1x128xf32>
    %32 = vector.extract_strided_slice %1 {offsets = [0, 0, 0], sizes = [4, 1, 1], strides = [1, 1, 1]} : vector<4x1x2xf32> to vector<4x1x1xf32>
    %33 = vector.broadcast %32 : vector<4x1x1xf32> to vector<4x1x128xf32>
    %34 = vector.broadcast %11 : vector<1x1x128xf32> to vector<4x1x128xf32>
    %35 = arith.mulf %33, %34 : vector<4x1x128xf32>
    %36 = arith.addf %31, %35 : vector<4x1x128xf32>
    %37 = vector.extract_strided_slice %1 {offsets = [0, 0, 1], sizes = [4, 1, 1], strides = [1, 1, 1]} : vector<4x1x2xf32> to vector<4x1x1xf32>
    %38 = vector.broadcast %37 : vector<4x1x1xf32> to vector<4x1x128xf32>
    %39 = vector.broadcast %13 : vector<1x1x128xf32> to vector<4x1x128xf32>
    %40 = arith.mulf %38, %39 : vector<4x1x128xf32>
    %41 = arith.addf %36, %40 : vector<4x1x128xf32>
    %42 = vector.broadcast %15 : vector<1x1x128xf32> to vector<4x1x128xf32>
    %43 = arith.addf %41, %42 : vector<4x1x128xf32>
    %44 = vector.extract_strided_slice %0 {offsets = [0, 0, 0], sizes = [4, 8, 1], strides = [1, 1, 1]} : vector<4x8x2xf32> to vector<4x8x1xf32>
    %45 = vector.broadcast %44 : vector<4x8x1xf32> to vector<4x8x128xf32>
    %46 = vector.broadcast %3 : vector<1x1x128xf32> to vector<4x8x128xf32>
    %47 = arith.mulf %45, %46 : vector<4x8x128xf32>
    %48 = vector.extract_strided_slice %0 {offsets = [0, 0, 1], sizes = [4, 8, 1], strides = [1, 1, 1]} : vector<4x8x2xf32> to vector<4x8x1xf32>
    %49 = vector.broadcast %48 : vector<4x8x1xf32> to vector<4x8x128xf32>
    %50 = vector.broadcast %5 : vector<1x1x128xf32> to vector<4x8x128xf32>
    %51 = arith.mulf %49, %50 : vector<4x8x128xf32>
    %52 = arith.addf %47, %51 : vector<4x8x128xf32>
    %53 = vector.broadcast %43 : vector<4x1x128xf32> to vector<4x8x128xf32>
    %54 = arith.addf %52, %53 : vector<4x8x128xf32>
    %55 = math.tanh %54 : vector<4x8x128xf32>
    %56 = vector.broadcast %17 : vector<1x1x128xf32> to vector<4x8x128xf32>
    %57 = arith.mulf %55, %56 : vector<4x8x128xf32>
    %cst_16 = arith.constant dense<0.000000e+00> : vector<4x8xf32>
    %58 = vector.multi_reduction <add>, %57, %cst_16 [2] : vector<4x8x128xf32> to vector<4x8xf32>
    %59 = vector.broadcast %18 : vector<1x1xf32> to vector<4x8xf32>
    %60 = arith.addf %58, %59 : vector<4x8xf32>
    %61 = arith.negf %60 : vector<4x8xf32>
    %62 = math.exp %61 : vector<4x8xf32>
    %cst_17 = arith.constant 1.000000e+00 : f32
    %63 = vector.broadcast %cst_17 : f32 to vector<4x8xf32>
    %64 = arith.addf %63, %62 : vector<4x8xf32>
    %65 = arith.divf %63, %64 : vector<4x8xf32>
    %c0_18 = arith.constant 0 : index
    %c0_19 = arith.constant 0 : index
    %66 = vector.load %arg3[%c0_18, %c0_19] : memref<4x8xf32, #tpu.memory_space<vmem>>, vector<4x8xf32>
    tpu.vector_store %arg3[%c0_18, %c0_19], %65 {strides = array<i32>} : memref<4x8xf32, #tpu.memory_space<vmem>>, vector<4x8xf32>,
    return
  }
}

</mosaic_0001>

<llo_original>
// kernel: tpu_custom_call.1
$region0: #{tpu_custom_call.1}
  #allocation0 [shape = 'u32[]', space=smem, size = 0x4, offset = 0x4, fixed_abs, tag = 'smem constant byte address 0x4 - core index']
  #allocation1 [shape = 'u32[72,128]{1,0:T(1,128)}', space=vmem, size = 0x9000, scoped, tag = 'internal scratch']
  %s0 = inlined_call_operand.vmem [shape: f32[4,8,2], index: 0, kind: input, shape index: {}]
  %s1 = inlined_call_operand.vmem [shape: f32[4,1,2], index: 1, kind: input, shape index: {}]
  %s2 = inlined_call_operand.vmem [shape: f32[16,128], index: 2, kind: input, shape index: {}]
  %s3 = inlined_call_operand.hbm [shape: f32[4,8], index: 3, kind: output, shape index: {}]
  %s4 = sld [smem:[#allocation0]]
  $region22: #{tpu_custom_call.1} parent=0
    _
  %s6 = ssub.s32 1, %s4
  %s7 = scalar_select 0, %s6, %s4
  $region1: #{tpu_custom_call.1} parent=0
    #allocation2 [shape = 'u8[2048]{0}', space=vmem, size = 0x800, scoped, tag = 'output window, operand 0, single buffered']
    #allocation3 [shape = 's32[1]{0}', space=sflag, size = 0x4, scoped, tag = 'scoped memory for tpu_custom_call.1']
    %8 = vsyncpa [#allocation3], 0
    // Predicated region
    $region2: #{tpu_custom_call.1} parent=1 // pred_check
      _
    $region3: #{tpu_custom_call.1} parent=1 // pred_check_branch
      %10 = sbr.rel (0) target = $region5
    $region4: #{tpu_custom_call.1} parent=1 // pred_region
      _
    $region5: #{tpu_custom_call.1} parent=1 // pred_fallthru
      _
    // Predicated region
    $region6: #{tpu_custom_call.1} parent=1 // pred_check
      _
    $region7: #{tpu_custom_call.1} parent=1 // pred_check_branch
      %12 = sbr.rel (0) target = $region9
    $region8: #{tpu_custom_call.1} parent=1 // pred_region
      _
    $region9: #{tpu_custom_call.1} parent=1 // pred_fallthru
      _
    // Predicated region
    $region10: #{tpu_custom_call.1} parent=1 // pred_check
      _
    $region11: #{tpu_custom_call.1} parent=1 // pred_check_branch
      %14 = sbr.rel (0) target = $region13
    $region12: #{tpu_custom_call.1} parent=1 // pred_region
      _
    $region13: #{tpu_custom_call.1} parent=1 // pred_fallthru
      _
    %v15 = vld [vmem:[%s0] sm:$0xff]
    %v16 = vld [vmem:[%s0 + $0x8] sm:$0xff]
    %v17 = vld [vmem:[%s0 + $0x10] sm:$0xff]
    %v18 = vld [vmem:[%s0 + $0x18] sm:$0xff]
    %v19 = vld [vmem:[%s1] sm:$0x1]
    %v20 = vld [vmem:[%s1 + $0x1] sm:$0x1]
    %v21 = vld [vmem:[%s1 + $0x2] sm:$0x1]
    %v22 = vld [vmem:[%s1 + $0x3] sm:$0x1]
    %v23 = vld [vmem:[%s2] sm:$0x1]
    %v24 = vld [vmem:[%s2 + $0x1] sm:$0x1]
    %v25 = vld [vmem:[%s2 + $0x2] sm:$0x1]
    %v26 = vld [vmem:[%s2 + $0x3] sm:$0x1]
    %v27 = vld [vmem:[%s2 + $0x4] sm:$0x1]
    %v28 = vld [vmem:[%s2 + $0x5] sm:$0x1]
    %v29 = vld [vmem:[%s2 + $0x6] sm:$0x1]
    %v30 = vld [vmem:[%s2 + $0x7] sm:$0x1]
    %v31 = vld [vmem:[%s2 + $0x8] sm:$0x1]
    %vm32 = vcmask 15360
    %v33 = vsel %vm32, %v15, 0.0
    %v34 = vrot.slane %v33, 4
    %v35 = vadd.f32 %v33, %v34
    %v36 = vrot.slane %v35, 2
    %v37 = vadd.f32 %v35, %v36
    %v38 = vrot.slane %v37, 1
    %v39 = vadd.f32 %v37, %v38
    %v40 = vsel %vm32, %v16, 0.0
    %v41 = vrot.slane %v40, 4
    %v42 = vadd.f32 %v40, %v41
    %v43 = vrot.slane %v42, 2
    %v44 = vadd.f32 %v42, %v43
    %v45 = vrot.slane %v44, 1
    %v46 = vadd.f32 %v44, %v45
    %v47 = vsel %vm32, %v17, 0.0
    %v48 = vrot.slane %v47, 4
    %v49 = vadd.f32 %v47, %v48
    %v50 = vrot.slane %v49, 2
    %v51 = vadd.f32 %v49, %v50
    %v52 = vrot.slane %v51, 1
    %v53 = vadd.f32 %v51, %v52
    %v54 = vsel %vm32, %v18, 0.0
    %v55 = vrot.slane %v54, 4
    %v56 = vadd.f32 %v54, %v55
    %v57 = vrot.slane %v56, 2
    %v58 = vadd.f32 %v56, %v57
    %v59 = vrot.slane %v58, 1
    %v60 = vadd.f32 %v58, %v59
    %v61 = vrcp.pop 8.0
    %v62 = vmul.f32 8.0, %v61
    %v63 = vsub.f32 1.0, %v62
    %v64 = vmul.f32 %v61, %v63
    %v65 = vadd.f32 %v61, %v64
    %vm66 = vweird.f32 %v61
    %v67 = vsel %vm66, %v61, %v65
    %v68 = vmul.f32 %v39, %v67
    %v69 = vmul.f32 %v46, %v67
    %v70 = vmul.f32 %v53, %v67
    %v71 = vmul.f32 %v60, %v67
    %73 = vset.pattern.permute.xlu0 0
    %74 = vperm.xlu0 %73, %v68
    %v75 = vpop.permute.xlu0 %74
    %78 = vset.pattern.permute.xlu0 0
    %79 = vperm.xlu0 %78, %v69
    %v80 = vpop.permute.xlu0 %79
    %83 = vset.pattern.permute.xlu0 0
    %84 = vperm.xlu0 %83, %v70
    %v85 = vpop.permute.xlu0 %84
    %88 = vset.pattern.permute.xlu0 0
    %89 = vperm.xlu0 %88, %v71
    %v90 = vpop.permute.xlu0 %89
    %v92 = vmul.f32 %v75, %v25
    %v93 = vmul.f32 %v80, %v25
    %v94 = vmul.f32 %v85, %v25
    %v95 = vmul.f32 %v90, %v25
    %96 = vset.pattern.permute.xlu0 1
    %97 = vperm.xlu0 %96, %v68
    %v98 = vpop.permute.xlu0 %97
    %100 = vset.pattern.permute.xlu0 1
    %101 = vperm.xlu0 %100, %v69
    %v102 = vpop.permute.xlu0 %101
    %104 = vset.pattern.permute.xlu0 1
    %105 = vperm.xlu0 %104, %v70
    %v106 = vpop.permute.xlu0 %105
    %108 = vset.pattern.permute.xlu0 1
    %109 = vperm.xlu0 %108, %v71
    %v110 = vpop.permute.xlu0 %109
    %v112 = vmul.f32 %v98, %v26
    %v113 = vmul.f32 %v102, %v26
    %v114 = vmul.f32 %v106, %v26
    %v115 = vmul.f32 %v110, %v26
    %v116 = vadd.f32 %v92, %v112
    %v117 = vadd.f32 %v93, %v113
    %v118 = vadd.f32 %v94, %v114
    %v119 = vadd.f32 %v95, %v115
    %121 = vset.pattern.permute.xlu0 0
    %122 = vperm.xlu0 %121, %v19
    %v123 = vpop.permute.xlu0 %122
    %v125 = vperm.slane %v123, 0
    %127 = vset.pattern.permute.xlu0 0
    %128 = vperm.xlu0 %127, %v20
    %v129 = vpop.permute.xlu0 %128
    %v131 = vperm.slane %v129, 0
    %133 = vset.pattern.permute.xlu0 0
    %134 = vperm.xlu0 %133, %v21
    %v135 = vpop.permute.xlu0 %134
    %v137 = vperm.slane %v135, 0
    %139 = vset.pattern.permute.xlu0 0
    %140 = vperm.xlu0 %139, %v22
    %v141 = vpop.permute.xlu0 %140
    %v143 = vperm.slane %v141, 0
    %v144 = vmul.f32 %v125, %v27
    %v145 = vmul.f32 %v131, %v27
    %v146 = vmul.f32 %v137, %v27
    %v147 = vmul.f32 %v143, %v27
    %v148 = vadd.f32 %v116, %v144
    %v149 = vadd.f32 %v117, %v145
    %v150 = vadd.f32 %v118, %v146
    %v151 = vadd.f32 %v119, %v147
    %152 = vset.pattern.permute.xlu0 1
    %153 = vperm.xlu0 %152, %v19
    %v154 = vpop.permute.xlu0 %153
    %v156 = vperm.slane %v154, 0
    %157 = vset.pattern.permute.xlu0 1
    %158 = vperm.xlu0 %157, %v20
    %v159 = vpop.permute.xlu0 %158
    %v161 = vperm.slane %v159, 0
    %162 = vset.pattern.permute.xlu0 1
    %163 = vperm.xlu0 %162, %v21
    %v164 = vpop.permute.xlu0 %163
    %v166 = vperm.slane %v164, 0
    %167 = vset.pattern.permute.xlu0 1
    %168 = vperm.xlu0 %167, %v22
    %v169 = vpop.permute.xlu0 %168
    %v171 = vperm.slane %v169, 0
    %v172 = vmul.f32 %v156, %v28
    %v173 = vmul.f32 %v161, %v28
    %v174 = vmul.f32 %v166, %v28
    %v175 = vmul.f32 %v171, %v28
    %v176 = vadd.f32 %v148, %v172
    %v177 = vadd.f32 %v149, %v173
    %v178 = vadd.f32 %v150, %v174
    %v179 = vadd.f32 %v151, %v175
    %v180 = vadd.f32 %v176, %v29
    %v181 = vadd.f32 %v177, %v29
    %v182 = vadd.f32 %v178, %v29
    %v183 = vadd.f32 %v179, %v29
    %185 = vset.pattern.permute.xlu0 0
    %186 = vperm.xlu0 %185, %v15
    %v187 = vpop.permute.xlu0 %186
    %190 = vset.pattern.permute.xlu0 0
    %191 = vperm.xlu0 %190, %v16
    %v192 = vpop.permute.xlu0 %191
    %195 = vset.pattern.permute.xlu0 0
    %196 = vperm.xlu0 %195, %v17
    %v197 = vpop.permute.xlu0 %196
    %200 = vset.pattern.permute.xlu0 0
    %201 = vperm.xlu0 %200, %v18
    %v202 = vpop.permute.xlu0 %201
    %v204 = vperm.slane %v23, 0
    %v205 = vmul.f32 %v187, %v204
    %v206 = vmul.f32 %v192, %v204
    %v207 = vmul.f32 %v197, %v204
    %v208 = vmul.f32 %v202, %v204
    %209 = vset.pattern.permute.xlu0 1
    %210 = vperm.xlu0 %209, %v15
    %v211 = vpop.permute.xlu0 %210
    %213 = vset.pattern.permute.xlu0 1
    %214 = vperm.xlu0 %213, %v16
    %v215 = vpop.permute.xlu0 %214
    %217 = vset.pattern.permute.xlu0 1
    %218 = vperm.xlu0 %217, %v17
    %v219 = vpop.permute.xlu0 %218
    %221 = vset.pattern.permute.xlu0 1
    %222 = vperm.xlu0 %221, %v18
    %v223 = vpop.permute.xlu0 %222
    %v225 = vperm.slane %v24, 0
    %v226 = vmul.f32 %v211, %v225
    %v227 = vmul.f32 %v215, %v225
    %v228 = vmul.f32 %v219, %v225
    %v229 = vmul.f32 %v223, %v225
    %v230 = vadd.f32 %v205, %v226
    %v231 = vadd.f32 %v206, %v227
    %v232 = vadd.f32 %v207, %v228
    %v233 = vadd.f32 %v208, %v229
    %v234 = vperm.slane %v180, 0
    %v235 = vperm.slane %v181, 0
    %v236 = vperm.slane %v182, 0
    %v237 = vperm.slane %v183, 0
    %v238 = vadd.f32 %v230, %v234
    %v239 = vadd.f32 %v231, %v235
    %v240 = vadd.f32 %v232, %v236
    %v241 = vadd.f32 %v233, %v237
    %v242 = vtanh.pop %v238
    %v243 = vtanh.pop %v239
    %v244 = vtanh.pop %v240
    %v245 = vtanh.pop %v241
    %v246 = vperm.slane %v30, 0
    %v247 = vmul.f32 %v242, %v246
    %v248 = vmul.f32 %v243, %v246
    %v249 = vmul.f32 %v244, %v246
    %v250 = vmul.f32 %v245, %v246
    %251 = vadd.xlane.f32.xlu0 %v247
    %v252 = vpop.xlane.xlu0 %251
    %253 = vadd.xlane.f32.xlu0 %v248
    %v254 = vpop.xlane.xlu0 %253
    %255 = vadd.xlane.f32.xlu0 %v249
    %v256 = vpop.xlane.xlu0 %255
    %257 = vadd.xlane.f32.xlu0 %v250
    %v258 = vpop.xlane.xlu0 %257
    %s260 = vtos %v31
    %v261 = vstv %s260
    %v263 = vadd.f32 %v252, %v261
    %v264 = vadd.f32 %v254, %v261
    %v265 = vadd.f32 %v256, %v261
    %v266 = vadd.f32 %v258, %v261
    %v267 = vxor.u32 %v263, 2147483648
    %v268 = vxor.u32 %v264, 2147483648
    %v269 = vxor.u32 %v265, 2147483648
    %v270 = vxor.u32 %v266, 2147483648
    %v271 = vmul.f32 %v267, 1.442695
    %v272 = vpow.pop %v271
    %v273 = vmul.f32 %v268, 1.442695
    %v274 = vpow.pop %v273
    %v275 = vmul.f32 %v269, 1.442695
    %v276 = vpow.pop %v275
    %v277 = vmul.f32 %v270, 1.442695
    %v278 = vpow.pop %v277
    %v279 = vadd.f32 %v272, 1.0
    %v280 = vadd.f32 %v274, 1.0
    %v281 = vadd.f32 %v276, 1.0
    %v282 = vadd.f32 %v278, 1.0
    %v283 = vrcp.pop %v279
    %v284 = vmul.f32 %v279, %v283
    %v285 = vsub.f32 1.0, %v284
    %v286 = vmul.f32 %v283, %v285
    %v287 = vadd.f32 %v283, %v286
    %vm288 = vweird.f32 %v279
    %vm289 = vweird.f32 %v283
    %vm290 = vmor %vm288, %vm289
    %v291 = vsel %vm290, %v283, %v287
    %v292 = vand.u32 2147483647, %v279
    %vm293 = vcmp.eq.f32.partialorder %v292, 8.507059e+37
    %v294 = vand.u32 %v279, 2147483648
    %v295 = vor.u32 1.1754944e-38, %v294
    %v296 = vsel %vm293, %v295, %v291
    %v297 = vmul.f32 1.0, %v296
    %v298 = vrcp.pop %v280
    %v299 = vmul.f32 %v280, %v298
    %v300 = vsub.f32 1.0, %v299
    %v301 = vmul.f32 %v298, %v300
    %v302 = vadd.f32 %v298, %v301
    %vm303 = vweird.f32 %v280
    %vm304 = vweird.f32 %v298
    %vm305 = vmor %vm303, %vm304
    %v306 = vsel %vm305, %v298, %v302
    %v307 = vand.u32 2147483647, %v280
    %vm308 = vcmp.eq.f32.partialorder %v307, 8.507059e+37
    %v309 = vand.u32 %v280, 2147483648
    %v310 = vor.u32 1.1754944e-38, %v309
    %v311 = vsel %vm308, %v310, %v306
    %v312 = vmul.f32 1.0, %v311
    %v313 = vrcp.pop %v281
    %v314 = vmul.f32 %v281, %v313
    %v315 = vsub.f32 1.0, %v314
    %v316 = vmul.f32 %v313, %v315
    %v317 = vadd.f32 %v313, %v316
    %vm318 = vweird.f32 %v281
    %vm319 = vweird.f32 %v313
    %vm320 = vmor %vm318, %vm319
    %v321 = vsel %vm320, %v313, %v317
    %v322 = vand.u32 2147483647, %v281
    %vm323 = vcmp.eq.f32.partialorder %v322, 8.507059e+37
    %v324 = vand.u32 %v281, 2147483648
    %v325 = vor.u32 1.1754944e-38, %v324
    %v326 = vsel %vm323, %v325, %v321
    %v327 = vmul.f32 1.0, %v326
    %v328 = vrcp.pop %v282
    %v329 = vmul.f32 %v282, %v328
    %v330 = vsub.f32 1.0, %v329
    %v331 = vmul.f32 %v328, %v330
    %v332 = vadd.f32 %v328, %v331
    %vm333 = vweird.f32 %v282
    %vm334 = vweird.f32 %v328
    %vm335 = vmor %vm333, %vm334
    %v336 = vsel %vm335, %v328, %v332
    %v337 = vand.u32 2147483647, %v282
    %vm338 = vcmp.eq.f32.partialorder %v337, 8.507059e+37
    %v339 = vand.u32 %v282, 2147483648
    %v340 = vor.u32 1.1754944e-38, %v339
    %v341 = vsel %vm338, %v340, %v336
    %v342 = vmul.f32 1.0, %v341
    %v347 = vlaneseq
    %v348 = vand.u32 %v347, 127
    %v349 = vperm.slane %v297, %v348
    %v350 = vperm.slane %v312, %v348
    %v351 = vperm.slane %v327, %v348
    %v352 = vperm.slane %v342, %v348
    %vm353 = vcmask 1041409
    %v354 = vsel %vm353, %v350, %v349
    %vm355 = vcmask 1042434
    %v356 = vsel %vm355, %v351, %v354
    %vm357 = vcmask 1043459
    %v358 = vsel %vm357, %v352, %v356
    %vm360 = vcmask 60416
    %361 = vst.msk [vmem:[#allocation2] sm:$0xf] %vm360, %v358
    // Predicated region
    $region14: #{tpu_custom_call.1} parent=1 // pred_check
      _
    $region15: #{tpu_custom_call.1} parent=1 // pred_check_branch
      %363 = sbr.rel (0) target = $region17
    $region16: #{tpu_custom_call.1} parent=1 // pred_region
      %365 = vsyncadd [#allocation3], 0
      %s367 = sshll.u32 [#allocation2], 4
      %s368 = int_to_ptr.vmem [resolvable:$true] %s367
      %s369 = sshll.u32 %s3, 4
      %s370 = int_to_ptr.hbm [resolvable:$true] %s369
      %372 = dma.vmem_to_hbm [thread:$0]  %s368, 64, %s370, [#allocation3]
    $region17: #{tpu_custom_call.1} parent=1 // pred_fallthru
      _
    // Predicated region
    $region18: #{tpu_custom_call.1} parent=1 // pred_check
      _
    $region19: #{tpu_custom_call.1} parent=1 // pred_check_branch
      %374 = sbr.rel (0) target = $region21
    $region20: #{tpu_custom_call.1} parent=1 // pred_region
      %376 = dma.done [#allocation3], 64
    $region21: #{tpu_custom_call.1} parent=1 // pred_fallthru
      _
    %377 = vsyncpa [#allocation3], 1

</llo_original>
